<compile_context>
chip_gen: v5e
topology: v5e:2x2
jax: 0.10.0
libtpu: 0.0.40
codegen_flags: <defaults>
</compile_context>

<pallas_src>
import functools

import numpy as np

import jax
import jax.numpy as jnp
from jax.experimental import pallas as pl
from jax.experimental.pallas import tpu as pltpu


_LANES = 128
_MAX_BLOCK_ROWS = 2048
_MIN_GRID_BLOCKS = 8     # target grid steps (megacore sharding on v7x's 2 TCs)
_F32_TEMP_TILES = 10     # in-kernel f32 working set (x, cov, s, c, sd, cd, a, u, w, tmp)


def _round_up(v, m):
    return -(-v // m) * m


def _make_freq_bands(max_freq_log2, N_freqs, log_sampling=True):
    """Mirror of the PyTorch __init__ freq_bands construction (static floats)."""
    if N_freqs <= 0:
        return []
    if log_sampling:
        bands = 2.0 ** np.linspace(0.0, max_freq_log2, N_freqs)
    else:
        bands = np.linspace(2.0 ** 0.0, 2.0 ** max_freq_log2, N_freqs)
    return [float(b) for b in bands]


def _plan_mode(freq_bands):
    """Pick the cheapest exact-enough evaluation scheme for the static band."""
    nf = len(freq_bands)
    if nf <= 1:
        return "direct"
    tol = 1e-6 * (max(abs(f) for f in freq_bands) + 1e-30)
    if all(abs(freq_bands[k + 1] - 2.0 * freq_bands[k]) <= tol for k in range(nf - 1)):
        return "double"            # octaves: double-angle recurrence
    d = freq_bands[1] - freq_bands[0]
    if all(abs((freq_bands[k + 1] - freq_bands[k]) - d) <= tol for k in range(nf - 1)):
        return "add"               # linear bands: angle-addition recurrence
    return "direct"                # irregular bands: per-frequency sin/cos


def _vmem_capacity_bytes():
    """Physical VMEM of this generation; conservative fallback if unknown."""
    try:
        cap = getattr(pltpu.get_tpu_info(), "vmem_capacity_bytes", None)
        if cap:
            return int(cap)
    except Exception:
        pass
    return 64 * 1024 * 1024        # v7x per-TensorCore capacity (smallest)


# ----------------------------- kernels ------------------------------------ #
# Kernels consume a lane-dense [block_rows, 128] tile of the flattened input
# and write the group-major output tile [n_groups, block_rows, 128] with one
# full, aligned store per group (no concat, no lane-sparse partial stores).


def _emit_embedding(x, o_ref, *, freq_bands, include_input, mode,
                    attens=None, cov=None):
    """Write groups [x?, sin f0, cos f0, sin f1, cos f1, ...] into o_ref.

    x:      f32 [block_rows, 128] tile.
    attens: optional python list of per-frequency scalar attenuations (SMEM).
    cov:    optional f32 [block_rows, 128] tile (tensor-cov path).
    Everything is traced/unrolled against the static freq_bands.
    """
    g = 0
    if include_input:
        o_ref[g] = x.astype(o_ref.dtype)
        g += 1
    nf = len(freq_bands)
    if nf == 0:
        return

    f0 = freq_bands[0]
    d = (freq_bands[1] - f0) if nf > 1 else 0.0

    # Attenuation state (tensor cov): a handful of exp() calls + cheap VPU
    # updates instead of N_freqs full-tile exps.
    a = u = w = None
    if cov is not None and mode in ("double", "add"):
        a = jnp.exp(cov * (-0.5 * f0 * f0))
        if mode == "add":
            u = jnp.exp(cov * (-(f0 * d + 0.5 * d * d)))
            w = jnp.exp(cov * (-(d * d)))

    # sin/cos state for the recurrences.
    if mode in ("double", "add"):
        s = jnp.sin(x * f0)
        c = jnp.cos(x * f0)
        if mode == "add":
            sd = jnp.sin(x * d)
            cd = jnp.cos(x * d)

    for k, fk in enumerate(freq_bands):
        if k > 0:
            if mode == "double":
                # sin(2t) = 2 sin t cos t ; cos(2t) = 1 - 2 sin^2 t
                s, c = 2.0 * s * c, 1.0 - 2.0 * s * s
                if cov is not None:
                    a2 = a * a                      # f doubles -> exponent x4
                    a = a2 * a2
            elif mode == "add":
                s, c = s * cd + c * sd, c * cd - s * sd
                if cov is not None:
                    a = a * u
                    u = u * w

        if mode == "direct":
            xf = x * fk
            sk, ck = jnp.sin(xf), jnp.cos(xf)
        else:
            sk, ck = s, c

        if cov is not None:
            ak = a if mode in ("double", "add") else jnp.exp(cov * (-0.5 * fk * fk))
            sk, ck = sk * ak, ck * ak
        elif attens is not None:
            sk, ck = sk * attens[k], ck * attens[k]

        o_ref[g] = sk.astype(o_ref.dtype)
        o_ref[g + 1] = ck.astype(o_ref.dtype)
        g += 2


def _embed_kernel_nocov(x_ref, o_ref, *, freq_bands, include_input, mode):
    x = x_ref[...].astype(jnp.float32)
    _emit_embedding(x, o_ref, freq_bands=freq_bands,
                    include_input=include_input, mode=mode)


def _embed_kernel_scalar_cov(atten_ref, x_ref, o_ref, *, freq_bands,
                             include_input, mode):
    # atten_ref: SMEM [N_freqs] f32 with atten[k] = exp(-0.5 * cov * f_k**2).
    x = x_ref[...].astype(jnp.float32)
    attens = [atten_ref[k] for k in range(len(freq_bands))]   # hoisted SMEM reads
    _emit_embedding(x, o_ref, freq_bands=freq_bands,
                    include_input=include_input, mode=mode, attens=attens)


def _embed_kernel_tensor_cov(x_ref, cov_ref, o_ref, *, freq_bands,
                             include_input, mode):
    x = x_ref[...].astype(jnp.float32)
    cov = cov_ref[...].astype(jnp.float32)
    _emit_embedding(x, o_ref, freq_bands=freq_bands,
                    include_input=include_input, mode=mode, cov=cov)


# ----------------------------- wrapper ------------------------------------- #


class Embedder:
    """JAX/Pallas counterpart of the PyTorch Embedder module (sin/cos fns)."""

    def __init__(self, input_dim, max_freq_log2, N_freqs, log_sampling=True,
                 include_input=True):
        self.input_dim = input_dim
        self.include_input = include_input
        self.N_freqs = N_freqs
        self.freq_bands = _make_freq_bands(max_freq_log2, N_freqs, log_sampling)
        self.mode = _plan_mode(self.freq_bands)
        self.n_groups = (1 if include_input else 0) + 2 * N_freqs
        self.out_dim = self.n_groups * input_dim

    def __call__(self, x, cov_input=None, *, block_rows=None, out_dtype=None,
                 layout="torch"):
        """
        layout="torch"       -> [..., out_dim], exactly the PyTorch concat layout.
        layout="group_major" -> [n_groups, ..., input_dim]; skips the final HBM
                                transpose for consumers that fuse the permutation.
        out_dtype            -> defaults to the input float dtype; pass
                                jnp.bfloat16 for bf16 consumers to halve the
                                dominant output HBM stream (compute stays f32).
        """
        D = self.input_dim
        assert x.shape[-1] == D
        lead_shape = x.shape[:-1]

        if out_dtype is None:
            out_dtype = x.dtype if jnp.issubdtype(x.dtype, jnp.floating) else jnp.float32
        out_dtype = jnp.dtype(out_dtype)

        N = int(np.prod(lead_shape, dtype=np.int64)) if lead_shape else 1
        L = N * D
        if L == 0 or self.n_groups == 0:
            if layout == "group_major":
                return jnp.zeros((self.n_groups, *lead_shape, D), out_dtype)
            return jnp.zeros((*lead_shape, self.out_dim), out_dtype)

        # ---- classify cov_input (specialize: no dummy zero-cov traffic) ----
        if isinstance(cov_input, (int, float)) and cov_input == 0:
            cov_input = None          # PyTorch default torch.tensor(0): atten == 1
        cov_mode, cov_flat, atten = "none", None, None
        if cov_input is not None:
            cov_arr = jnp.asarray(cov_input)
            if cov_arr.size == 1:
                if self.N_freqs > 0:
                    cov_mode = "scalar"
                    c = cov_arr.reshape(()).astype(jnp.float32)
                    f2 = jnp.asarray([f * f for f in self.freq_bands], jnp.float32)
                    atten = jnp.exp(-0.5 * c * f2)   # tiny [N_freqs] table -> SMEM
            else:
                # TODO(synk): cov of shape [..., 1] is materialized to x.shape here;
                # a per-token column + in-kernel lane repeat would avoid the copy.
                cov_mode = "tensor"
                cov_flat = jnp.broadcast_to(cov_arr, x.shape).reshape(-1)

        # ---- lane-dense flattening; pad only when L is not lane-aligned ----
        x_flat = x.reshape(-1)                    # cast to f32 inside the kernel
        rows = max(-(-L // _LANES), 8)            # >= 8 so the block never exceeds the array
        pad = rows * _LANES - L
        if pad:
            # Padded tail elements run through sin/cos/exp on garbage/zeros and
            # are sliced off afterwards -- harmless by construction.
            x_flat = jnp.pad(x_flat, (0, pad))
            if cov_mode == "tensor":
                cov_flat = jnp.pad(cov_flat, (0, pad))
        x2 = x_flat.reshape(rows, _LANES)

        # ---- generation-aware row-block sizing ----
        vmem_cap = _vmem_capacity_bytes()
        io_budget = min(vmem_cap // 6, 24 * 1024 * 1024)
        in_bytes = x.dtype.itemsize + (cov_flat.dtype.itemsize if cov_mode == "tensor" else 0)
        per_row_bytes = _LANES * (2 * in_bytes                              # dbl-buffered inputs
                                  + 2 * self.n_groups * out_dtype.itemsize  # dbl-buffered output
                                  + _F32_TEMP_TILES * 4)                    # f32 working set
        if block_rows is None:
            block_rows = io_budget // per_row_bytes
            # Keep >= _MIN_GRID_BLOCKS grid steps when rows allow (v7x megacore).
            block_rows = min(block_rows, _round_up(-(-rows // _MIN_GRID_BLOCKS), 8))
        block_rows = int(block_rows)
        block_rows = max(8, min(block_rows, _MAX_BLOCK_ROWS, (rows // 8) * 8))
        block_rows = (block_rows // 8) * 8
        n_blocks = -(-rows // block_rows)          # last block is masked by Pallas

        data_spec = pl.BlockSpec((block_rows, _LANES), lambda i: (i, 0))
        out_spec = pl.BlockSpec((self.n_groups, block_rows, _LANES), lambda i: (0, i, 0))
        out_shape = jax.ShapeDtypeStruct((self.n_groups, rows, _LANES), out_dtype)
        # Explicit scoped-VMEM limit (defaults: 16 MiB v5e / 32 MiB v6e,v7x).
        cparams = pltpu.CompilerParams(
            dimension_semantics=("parallel",),
            vmem_limit_bytes=int(min(vmem_cap * 3 // 4, 128 * 1024 * 1024)))

        common = dict(freq_bands=self.freq_bands, include_input=self.include_input,
                      mode=self.mode)
        if cov_mode == "none":
            out3 = pl.pallas_call(
                functools.partial(_embed_kernel_nocov, **common),
                out_shape=out_shape, grid=(n_blocks,),
                in_specs=[data_spec], out_specs=out_spec,
                compiler_params=cparams)(x2)
        elif cov_mode == "scalar":
            out3 = pl.pallas_call(
                functools.partial(_embed_kernel_scalar_cov, **common),
                out_shape=out_shape, grid=(n_blocks,),
                in_specs=[pl.BlockSpec(memory_space=pltpu.MemorySpace.SMEM), data_spec],
                out_specs=out_spec,
                compiler_params=cparams)(atten, x2)
        else:  # tensor cov
            cov2 = cov_flat.reshape(rows, _LANES)
            out3 = pl.pallas_call(
                functools.partial(_embed_kernel_tensor_cov, **common),
                out_shape=out_shape, grid=(n_blocks,),
                in_specs=[data_spec, data_spec], out_specs=out_spec,
                compiler_params=cparams)(x2, cov2)

        out_flat = out3.reshape(self.n_groups, rows * _LANES)[:, :L]
        if layout == "group_major":
            return out_flat.reshape(self.n_groups, *lead_shape, D)
        # group-major [n_groups, N, D] -> PyTorch concat layout [N, n_groups*D].
        # This permutation is one extra HBM pass over the amplified output; use
        # layout="group_major" to push it into a fused consumer instead.
        out = jnp.transpose(out_flat.reshape(self.n_groups, N, D), (1, 0, 2))
        return out.reshape(*lead_shape, self.out_dim)


# ----------------------------- reference ----------------------------------- #


def _reference_embed(emb, x, cov=None):
    """Pure-JAX reference matching the PyTorch forward exactly (f32 math)."""
    xf = x.astype(jnp.float32)
    outs = []
    if emb.include_input:
        outs.append(xf)
    for f in emb.freq_bands:
        atten = 1.0 if cov is None else jnp.exp(
            -0.5 * (jnp.asarray(cov, jnp.float32) * (f ** 2)))
        outs.append(jnp.sin(xf * f) * atten)
        outs.append(jnp.cos(xf * f) * atten)
    return jnp.concatenate(outs, axis=-1)


if __name__ == "__main__":
    key = jax.random.PRNGKey(0)
    k1, k2 = jax.random.split(key)

    # Small NeRF-like shapes: batch of rays x samples, 3-D positions.
    batch, samples, input_dim = 2, 64, 3
    N_freqs, max_freq_log2 = 4, 3.0

    x = jax.random.normal(k1, (batch, samples, input_dim), dtype=jnp.float32)
    cov = jax.random.uniform(k2, (batch, samples, input_dim), dtype=jnp.float32)

    # Octave bands (log sampling) -> double-angle recurrence path.
    emb = Embedder(input_dim, max_freq_log2, N_freqs, log_sampling=True,
                   include_input=True)
    assert emb.mode == "double", emb.mode
    # Linear bands -> angle-addition recurrence path.
    emb_lin = Embedder(input_dim, max_freq_log2, N_freqs, log_sampling=False,
                       include_input=True)
    assert emb_lin.mode == "add", emb_lin.mode

    out_none = jax.block_until_ready(emb(x))                        # no cov
    out_scal = jax.block_until_ready(emb(x, 0.25))                  # scalar cov (SMEM table)
    out_tens = jax.block_until_ready(emb(x, cov))                   # tensor cov (exp chain)
    out_lin = jax.block_until_ready(emb_lin(x))                     # angle-addition sin/cos
    out_lint = jax.block_until_ready(emb_lin(x, cov))               # angle-addition + exp ladder
    out_gm = jax.block_until_ready(emb(x, layout="group_major"))    # fused-consumer layout
    x_bf16 = x.astype(jnp.bfloat16)
    out_bf = jax.block_until_ready(emb(x_bf16, out_dtype=jnp.bfloat16))

    ref_none = _reference_embed(emb, x)
    ref_scal = _reference_embed(emb, x, 0.25)
    ref_tens = _reference_embed(emb, x, cov)
    ref_lin = _reference_embed(emb_lin, x)
    ref_lint = _reference_embed(emb_lin, x, cov)
    ref_bf = _reference_embed(emb, x_bf16.astype(jnp.float32))

    assert out_none.shape == (batch, samples, emb.out_dim), out_none.shape
    assert out_none.dtype == jnp.float32
    assert out_bf.dtype == jnp.bfloat16
    assert out_gm.shape == (emb.n_groups, batch, samples, input_dim)

    tol = dict(atol=1e-4, rtol=1e-4)
    assert jnp.allclose(out_none, ref_none, **tol)
    assert jnp.allclose(out_scal, ref_scal, **tol)
    assert jnp.allclose(out_tens, ref_tens, **tol)
    assert jnp.allclose(out_lin, ref_lin, **tol)
    assert jnp.allclose(out_lint, ref_lint, **tol)
    gm_as_torch = jnp.transpose(out_gm, (1, 2, 0, 3)).reshape(batch, samples, emb.out_dim)
    assert jnp.allclose(gm_as_torch, out_none, atol=1e-6, rtol=0.0)
    assert jnp.allclose(out_bf.astype(jnp.float32), ref_bf, atol=2e-2, rtol=2e-2)

    print("KERNEL_OK")
</pallas_src>

<mosaic_0001>
module attributes {stable_mosaic.version = 11 : i64} {
  func.func @_embed_kernel_nocov(%arg0: i32, %arg1: memref<8x128xf32, #tpu.memory_space<vmem>>, %arg2: memref<9x8x128xf32, #tpu.memory_space<vmem>>) attributes {dimension_semantics = [#tpu.dimension_semantics<parallel>], iteration_bounds = array<i64: 1>, scalar_prefetch = 0 : i64, scratch_operands = 0 : i64, tpu.core_type = #tpu.core_type<tc>, window_params = [{transform_indices = @transform_0, window_bounds = array<i64: 8, 128>}, {transform_indices = @transform_1, window_bounds = array<i64: 9, 8, 128>}]} {
    %c0 = arith.constant 0 : index
    %c0_0 = arith.constant 0 : index
    %0 = vector.load %arg1[%c0, %c0_0] : memref<8x128xf32, #tpu.memory_space<vmem>>, vector<8x128xf32>
    %c0_1 = arith.constant 0 : index
    %c0_2 = arith.constant 0 : index
    %c0_3 = arith.constant 0 : index
    %1 = vector.load %arg2[%c0_1, %c0_2, %c0_3] : memref<9x8x128xf32, #tpu.memory_space<vmem>>, vector<1x8x128xf32>
    %2 = vector.shape_cast %1 : vector<1x8x128xf32> to vector<8x128xf32>
    %3 = vector.shape_cast %0 : vector<8x128xf32> to vector<1x8x128xf32>
    tpu.vector_store %arg2[%c0_1, %c0_2, %c0_3], %3 {strides = array<i32>} : memref<9x8x128xf32, #tpu.memory_space<vmem>>, vector<1x8x128xf32>,
    %cst = arith.constant 1.000000e+00 : f32
    %4 = vector.broadcast %cst : f32 to vector<8x128xf32>
    %5 = arith.mulf %0, %4 : vector<8x128xf32>
    %6 = math.sin %5 : vector<8x128xf32>
    %cst_4 = arith.constant 1.000000e+00 : f32
    %7 = vector.broadcast %cst_4 : f32 to vector<8x128xf32>
    %8 = arith.mulf %0, %7 : vector<8x128xf32>
    %9 = math.cos %8 : vector<8x128xf32>
    %c1 = arith.constant 1 : index
    %c0_5 = arith.constant 0 : index
    %c0_6 = arith.constant 0 : index
    %10 = vector.load %arg2[%c1, %c0_5, %c0_6] : memref<9x8x128xf32, #tpu.memory_space<vmem>>, vector<1x8x128xf32>
    %11 = vector.shape_cast %10 : vector<1x8x128xf32> to vector<8x128xf32>
    %12 = vector.shape_cast %6 : vector<8x128xf32> to vector<1x8x128xf32>
    tpu.vector_store %arg2[%c1, %c0_5, %c0_6], %12 {strides = array<i32>} : memref<9x8x128xf32, #tpu.memory_space<vmem>>, vector<1x8x128xf32>,
    %c2 = arith.constant 2 : index
    %c0_7 = arith.constant 0 : index
    %c0_8 = arith.constant 0 : index
    %13 = vector.load %arg2[%c2, %c0_7, %c0_8] : memref<9x8x128xf32, #tpu.memory_space<vmem>>, vector<1x8x128xf32>
    %14 = vector.shape_cast %13 : vector<1x8x128xf32> to vector<8x128xf32>
    %15 = vector.shape_cast %9 : vector<8x128xf32> to vector<1x8x128xf32>
    tpu.vector_store %arg2[%c2, %c0_7, %c0_8], %15 {strides = array<i32>} : memref<9x8x128xf32, #tpu.memory_space<vmem>>, vector<1x8x128xf32>,
    %cst_9 = arith.constant 2.000000e+00 : f32
    %16 = vector.broadcast %cst_9 : f32 to vector<8x128xf32>
    %17 = arith.mulf %16, %6 : vector<8x128xf32>
    %18 = arith.mulf %17, %9 : vector<8x128xf32>
    %cst_10 = arith.constant 2.000000e+00 : f32
    %19 = vector.broadcast %cst_10 : f32 to vector<8x128xf32>
    %20 = arith.mulf %19, %6 : vector<8x128xf32>
    %21 = arith.mulf %20, %6 : vector<8x128xf32>
    %cst_11 = arith.constant 1.000000e+00 : f32
    %22 = vector.broadcast %cst_11 : f32 to vector<8x128xf32>
    %23 = arith.subf %22, %21 : vector<8x128xf32>
    %c3 = arith.constant 3 : index
    %c0_12 = arith.constant 0 : index
    %c0_13 = arith.constant 0 : index
    %24 = vector.load %arg2[%c3, %c0_12, %c0_13] : memref<9x8x128xf32, #tpu.memory_space<vmem>>, vector<1x8x128xf32>
    %25 = vector.shape_cast %24 : vector<1x8x128xf32> to vector<8x128xf32>
    %26 = vector.shape_cast %18 : vector<8x128xf32> to vector<1x8x128xf32>
    tpu.vector_store %arg2[%c3, %c0_12, %c0_13], %26 {strides = array<i32>} : memref<9x8x128xf32, #tpu.memory_space<vmem>>, vector<1x8x128xf32>,
    %c4 = arith.constant 4 : index
    %c0_14 = arith.constant 0 : index
    %c0_15 = arith.constant 0 : index
    %27 = vector.load %arg2[%c4, %c0_14, %c0_15] : memref<9x8x128xf32, #tpu.memory_space<vmem>>, vector<1x8x128xf32>
    %28 = vector.shape_cast %27 : vector<1x8x128xf32> to vector<8x128xf32>
    %29 = vector.shape_cast %23 : vector<8x128xf32> to vector<1x8x128xf32>
    tpu.vector_store %arg2[%c4, %c0_14, %c0_15], %29 {strides = array<i32>} : memref<9x8x128xf32, #tpu.memory_space<vmem>>, vector<1x8x128xf32>,
    %cst_16 = arith.constant 2.000000e+00 : f32
    %30 = vector.broadcast %cst_16 : f32 to vector<8x128xf32>
    %31 = arith.mulf %30, %18 : vector<8x128xf32>
    %32 = arith.mulf %31, %23 : vector<8x128xf32>
    %cst_17 = arith.constant 2.000000e+00 : f32
    %33 = vector.broadcast %cst_17 : f32 to vector<8x128xf32>
    %34 = arith.mulf %33, %18 : vector<8x128xf32>
    %35 = arith.mulf %34, %18 : vector<8x128xf32>
    %cst_18 = arith.constant 1.000000e+00 : f32
    %36 = vector.broadcast %cst_18 : f32 to vector<8x128xf32>
    %37 = arith.subf %36, %35 : vector<8x128xf32>
    %c5 = arith.constant 5 : index
    %c0_19 = arith.constant 0 : index
    %c0_20 = arith.constant 0 : index
    %38 = vector.load %arg2[%c5, %c0_19, %c0_20] : memref<9x8x128xf32, #tpu.memory_space<vmem>>, vector<1x8x128xf32>
    %39 = vector.shape_cast %38 : vector<1x8x128xf32> to vector<8x128xf32>
    %40 = vector.shape_cast %32 : vector<8x128xf32> to vector<1x8x128xf32>
    tpu.vector_store %arg2[%c5, %c0_19, %c0_20], %40 {strides = array<i32>} : memref<9x8x128xf32, #tpu.memory_space<vmem>>, vector<1x8x128xf32>,
    %c6 = arith.constant 6 : index
    %c0_21 = arith.constant 0 : index
    %c0_22 = arith.constant 0 : index
    %41 = vector.load %arg2[%c6, %c0_21, %c0_22] : memref<9x8x128xf32, #tpu.memory_space<vmem>>, vector<1x8x128xf32>
    %42 = vector.shape_cast %41 : vector<1x8x128xf32> to vector<8x128xf32>
    %43 = vector.shape_cast %37 : vector<8x128xf32> to vector<1x8x128xf32>
    tpu.vector_store %arg2[%c6, %c0_21, %c0_22], %43 {strides = array<i32>} : memref<9x8x128xf32, #tpu.memory_space<vmem>>, vector<1x8x128xf32>,
    %cst_23 = arith.constant 2.000000e+00 : f32
    %44 = vector.broadcast %cst_23 : f32 to vector<8x128xf32>
    %45 = arith.mulf %44, %32 : vector<8x128xf32>
    %46 = arith.mulf %45, %37 : vector<8x128xf32>
    %cst_24 = arith.constant 2.000000e+00 : f32
    %47 = vector.broadcast %cst_24 : f32 to vector<8x128xf32>
    %48 = arith.mulf %47, %32 : vector<8x128xf32>
    %49 = arith.mulf %48, %32 : vector<8x128xf32>
    %cst_25 = arith.constant 1.000000e+00 : f32
    %50 = vector.broadcast %cst_25 : f32 to vector<8x128xf32>
    %51 = arith.subf %50, %49 : vector<8x128xf32>
    %c7 = arith.constant 7 : index
    %c0_26 = arith.constant 0 : index
    %c0_27 = arith.constant 0 : index
    %52 = vector.load %arg2[%c7, %c0_26, %c0_27] : memref<9x8x128xf32, #tpu.memory_space<vmem>>, vector<1x8x128xf32>
    %53 = vector.shape_cast %52 : vector<1x8x128xf32> to vector<8x128xf32>
    %54 = vector.shape_cast %46 : vector<8x128xf32> to vector<1x8x128xf32>
    tpu.vector_store %arg2[%c7, %c0_26, %c0_27], %54 {strides = array<i32>} : memref<9x8x128xf32, #tpu.memory_space<vmem>>, vector<1x8x128xf32>,
    %c8 = arith.constant 8 : index
    %c0_28 = arith.constant 0 : index
    %c0_29 = arith.constant 0 : index
    %55 = vector.load %arg2[%c8, %c0_28, %c0_29] : memref<9x8x128xf32, #tpu.memory_space<vmem>>, vector<1x8x128xf32>
    %56 = vector.shape_cast %55 : vector<1x8x128xf32> to vector<8x128xf32>
    %57 = vector.shape_cast %51 : vector<8x128xf32> to vector<1x8x128xf32>
    tpu.vector_store %arg2[%c8, %c0_28, %c0_29], %57 {strides = array<i32>} : memref<9x8x128xf32, #tpu.memory_space<vmem>>, vector<1x8x128xf32>,
    return
  }
  func.func @transform_0(%arg0: i32) -> (i32, i32) {
    %c0_i32 = arith.constant 0 : i32
    %c0_i32_0 = arith.constant 0 : i32
    return %arg0, %c0_i32 : i32, i32
  }
  func.func @transform_1(%arg0: i32) -> (i32, i32, i32) {
    %c0_i32 = arith.constant 0 : i32
    %c0_i32_0 = arith.constant 0 : i32
    %c0_i32_1 = arith.constant 0 : i32
    return %c0_i32, %arg0, %c0_i32_0 : i32, i32, i32
  }
}

</mosaic_0001>

<llo_original>
// kernel: tpu_custom_call.1
$region0: #{tpu_custom_call.1}
  #allocation0 [shape = 'u32[]', space=smem, size = 0x4, offset = 0x4, fixed_abs, tag = 'smem constant byte address 0x4 - core index']
  #allocation1 [shape = 'u32[72,128]{1,0:T(1,128)}', space=vmem, size = 0x9000, scoped, tag = 'internal scratch']
  %s0 = inlined_call_operand.hbm [shape: f32[8,128], index: 0, kind: input, shape index: {}]
  %s1 = inlined_call_operand.hbm [shape: f32[9,8,128], index: 1, kind: output, shape index: {}]
  %s2 = sld [smem:[#allocation0]]
  $region18: #{tpu_custom_call.1} parent=0
    _
  %s4 = ssub.s32 1, %s2
  %s5 = scalar_select 0, %s4, %s2
  $region1: #{tpu_custom_call.1} parent=0
    #allocation2 [shape = 'u8[4096]{0}', space=vmem, size = 0x1000, scoped, tag = 'input window, operand 0, single buffered']
    #allocation3 [shape = 's32[1]{0}', space=sflag, size = 0x4, scoped, tag = 'scoped memory for tpu_custom_call.1']
    #allocation4 [shape = 's32[1]{0}', space=sflag, size = 0x4, scoped, tag = 'scoped memory for tpu_custom_call.1']
    #allocation5 [shape = 'u8[36864]{0}', space=vmem, size = 0x9000, scoped, tag = 'output window, operand 0, single buffered']
    %6 = vsyncpa [#allocation3], 0
    %7 = vsyncpa [#allocation4], 0
    // Predicated region
    $region2: #{tpu_custom_call.1} parent=1 // pred_check
      _
    $region3: #{tpu_custom_call.1} parent=1 // pred_check_branch
      %9 = sbr.rel (0) target = $region5
    $region4: #{tpu_custom_call.1} parent=1 // pred_region
      %11 = vsyncadd [#allocation3], 0
      %s13 = sshll.u32 %s0, 4
      %s14 = int_to_ptr.hbm [resolvable:$true] %s13
      %s15 = sshll.u32 [#allocation2], 4
      %s16 = int_to_ptr.vmem [resolvable:$true] %s15
      %18 = dma.hbm_to_vmem [thread:$0]  %s14, 128, %s16, [#allocation3]
    $region5: #{tpu_custom_call.1} parent=1 // pred_fallthru
      _
    // Predicated region
    $region6: #{tpu_custom_call.1} parent=1 // pred_check
      _
    $region7: #{tpu_custom_call.1} parent=1 // pred_check_branch
      %20 = sbr.rel (0) target = $region9
    $region8: #{tpu_custom_call.1} parent=1 // pred_region
      %22 = dma.done [#allocation3], 128
    $region9: #{tpu_custom_call.1} parent=1 // pred_fallthru
      _
    %v23 = vld [vmem:[#allocation2] sm:$0xff]
    %24 = vst [vmem:[#allocation5] sm:$0xff] %v23
    %v25 = vand.u32 2147483647, %v23
    %vm26 = vcmp.le.f32.partialorder %v25, 0.7853982
    %vm27 = vcmp.lt.s32.totalorder %v23, 0
    %v28 = vand.u32 %v23, 2139095040
    %v29 = vshrl.u32 %v28, 23
    %v30 = vsub.s32 %v29, 127
    %v31 = vand.u32 2147483647, %v23
    %v32 = vand.u32 %v31, 8388607
    %v33 = vor.u32 %v32, 8388608
    %v34 = vsub.s32 0, %v33
    %v35 = vadd.s32 %v30, 1
    %vm36 = vcmp.gt.s32.totalorder %v35, 0
    %v37 = vsel %vm36, %v35, 0
    %v38 = vshrl.u32 %v37, 5
    %v39 = vand.u32 %v37, 31
    %v40 = vsub.s32 32, %v39
    %v41 = vshrl.u32 683565275, %v40
    %v42 = vshll.u32 683565275, %v39
    %v43 = vshrl.u32 2475754826, %v40
    %v44 = vor.u32 %v42, %v43
    %v45 = vshll.u32 2475754826, %v39
    %v46 = vshrl.u32 2131351028, %v40
    %v47 = vor.u32 %v45, %v46
    %v48 = vshll.u32 2131351028, %v39
    %v49 = vshrl.u32 2102212464, %v40
    %v50 = vor.u32 %v48, %v49
    %v51 = vshll.u32 2102212464, %v39
    %v52 = vshrl.u32 920167782, %v40
    %v53 = vor.u32 %v51, %v52
    %v54 = vshll.u32 920167782, %v39
    %v55 = vshrl.u32 1326507024, %v40
    %v56 = vor.u32 %v54, %v55
    %vm57 = vcmp.lt.s32.totalorder %v38, 1
    %vm58 = vcmp.lt.s32.totalorder %v38, 2
    %vm59 = vcmp.lt.s32.totalorder %v38, 3
    %vm60 = vcmp.lt.s32.totalorder %v38, 4
    %v61 = vsel %vm57, %v41, %v44
    %v62 = vsel %vm60, %v50, 2102212464
    %v63 = vsel %vm59, %v47, %v62
    %v64 = vsel %vm58, %v61, %v63
    %v65 = vsel %vm57, %v44, %v47
    %v66 = vsel %vm60, %v53, 920167782
    %v67 = vsel %vm59, %v50, %v66
    %v68 = vsel %vm58, %v65, %v67
    %v69 = vsel %vm57, %v47, %v50
    %v70 = vsel %vm60, %v56, 1326507024
    %v71 = vsel %vm59, %v53, %v70
    %v72 = vsel %vm58, %v69, %v71
    %v73 = vshll.u32 %v33, 8
    %v74 = vand.u32 %v73, 65535
    %v75 = vshrl.u32 %v73, 16
    %v76 = vand.u32 %v72, 65535
    %v77 = vshrl.u32 %v72, 16
    %v78 = vmul.u32 %v74, %v76
    %v79 = vmul.u32 %v74, %v77
    %v80 = vmul.u32 %v75, %v76
    %v81 = vmul.u32 %v75, %v77
    %v82 = vshll.u32 %v79, 16
    %v83 = vshrl.u32 %v79, 16
    %v84 = vshll.u32 %v80, 16
    %v85 = vshrl.u32 %v80, 16
    %vm86 = vc.u32 %v78, %v82
    %v87 = vsel %vm86, 1, 0
    %v88 = vadd.s32 %v78, %v82
    %v89 = vadd.s32 %v81, %v87
    %vm90 = vc.u32 %v88, %v84
    %v91 = vsel %vm90, 1, 0
    %v92 = vadd.s32 %v88, %v84
    %v93 = vadd.s32 %v89, %v91
    %v94 = vadd.s32 %v93, %v83
    %v95 = vadd.s32 %v94, %v85
    %v96 = vand.u32 %v73, 65535
    %v97 = vshrl.u32 %v73, 16
    %v98 = vand.u32 %v68, 65535
    %v99 = vshrl.u32 %v68, 16
    %v100 = vmul.u32 %v96, %v98
    %v101 = vmul.u32 %v96, %v99
    %v102 = vmul.u32 %v97, %v98
    %v103 = vmul.u32 %v97, %v99
    %v104 = vshll.u32 %v101, 16
    %v105 = vshrl.u32 %v101, 16
    %v106 = vshll.u32 %v102, 16
    %v107 = vshrl.u32 %v102, 16
    %vm108 = vc.u32 %v100, %v104
    %v109 = vsel %vm108, 1, 0
    %v110 = vadd.s32 %v100, %v104
    %v111 = vadd.s32 %v103, %v109
    %vm112 = vc.u32 %v110, %v106
    %v113 = vsel %vm112, 1, 0
    %v114 = vadd.s32 %v110, %v106
    %v115 = vadd.s32 %v111, %v113
    %v116 = vadd.s32 %v115, %v105
    %v117 = vadd.s32 %v116, %v107
    %v118 = vmul.u32 %v73, %v64
    %v119 = vadd.s32 %v95, %v114
    %vm120 = vc.u32 %v95, %v114
    %v121 = vadd.s32 %v117, 1
    %v122 = vsel %vm120, %v121, %v117
    %v123 = vadd.s32 %v118, %v122
    %v124 = vadd.s32 %v123, 536870912
    %v125 = vshrl.u32 %v124, 30
    %v126 = vshll.u32 %v125, 30
    %v127 = vsub.s32 %v123, %v126
    %vm128 = vcmp.lt.s32.totalorder %v127, 0
    %v129 = vsub.s32 0, %v127
    %v130 = vsel %vm128, %v129, %v127
    %v131 = vclz %v130
    %v132 = vsub.s32 %v131, 2
    %vm133 = vcmp.gt.s32.totalorder 0, %v132
    %v134 = vsel %vm133, 0, %v132
    %v135 = vsub.s32 32, %v134
    %v136 = vshll.u32 %v127, %v134
    %v137 = vshrl.u32 %v119, %v135
    %v138 = vor.u32 %v136, %v137
    %v139 = vsub.s32 4294967266, %v134
    %v140 = vadd.s32 %v139, 127
    %v141 = vshll.u32 %v140, 23
    %v142 = vor.u32 4788187, %v141
    %v143 = vand.u32 2147483647, %v142
    %v145 = vcvt.s32.f32 %v138
    %v146 = vmul.f32 %v145, %v143
    %v147 = vxor.u32 %v146, 2147483648
    %v148 = vsel %vm27, %v147, %v146
    %v149 = vsub.s32 4, %v125
    %v150 = vsel %vm27, %v149, %v125
    %v151 = vsel %vm26, %v23, %v148
    %v152 = vsel %vm26, 0, %v150
    %v153 = vmul.f32 %v151, %v151
    %v154 = vmul.f32 %v153, -0.001358992
    %v155 = vadd.f32 %v154, 0.041655596
    %v156 = vmul.f32 %v153, %v155
    %v157 = vadd.f32 %v156, -0.4999988
    %v158 = vmul.f32 %v153, %v157
    %v159 = vadd.f32 1.0, %v158
    %v160 = vmul.f32 %v151, %v151
    %v161 = vmul.f32 %v160, -0.00019511016
    %v162 = vadd.f32 %v161, 0.008332121
    %v163 = vmul.f32 %v160, %v162
    %v164 = vadd.f32 %v163, -0.16666654
    %v165 = vmul.f32 %v160, %v164
    %v166 = vadd.f32 %v165, 1.0
    %v167 = vmul.f32 %v166, %v151
    %vm168 = vweird.f32 %v23
    %v169 = vadd.s32 %v152, 3
    %v170 = vand.u32 %v169, 3
    %vm171 = vcmp.lt.s32.totalorder %v170, 2
    %vm172 = vcmp.eq.s32.totalorder %v170, 0
    %v173 = vxor.u32 %v167, 2147483648
    %v174 = vsel %vm172, %v159, %v173
    %vm175 = vcmp.eq.s32.totalorder %v170, 2
    %v176 = vxor.u32 %v159, 2147483648
    %v177 = vsel %vm175, %v176, %v167
    %v178 = vsel %vm171, %v174, %v177
    %v179 = vsel %vm168, nan, %v178
    %v180 = vand.u32 2147483647, %v23
    %vm181 = vcmp.le.f32.partialorder %v180, 0.7853982
    %vm182 = vcmp.lt.s32.totalorder %v23, 0
    %v183 = vand.u32 %v23, 2139095040
    %v184 = vshrl.u32 %v183, 23
    %v185 = vsub.s32 %v184, 127
    %v186 = vand.u32 2147483647, %v23
    %v187 = vand.u32 %v186, 8388607
    %v188 = vor.u32 %v187, 8388608
    %v189 = vsub.s32 0, %v188
    %v190 = vadd.s32 %v185, 1
    %vm191 = vcmp.gt.s32.totalorder %v190, 0
    %v192 = vsel %vm191, %v190, 0
    %v193 = vshrl.u32 %v192, 5
    %v194 = vand.u32 %v192, 31
    %v195 = vsub.s32 32, %v194
    %v196 = vshrl.u32 683565275, %v195
    %v197 = vshll.u32 683565275, %v194
    %v198 = vshrl.u32 2475754826, %v195
    %v199 = vor.u32 %v197, %v198
    %v200 = vshll.u32 2475754826, %v194
    %v201 = vshrl.u32 2131351028, %v195
    %v202 = vor.u32 %v200, %v201
    %v203 = vshll.u32 2131351028, %v194
    %v204 = vshrl.u32 2102212464, %v195
    %v205 = vor.u32 %v203, %v204
    %v206 = vshll.u32 2102212464, %v194
    %v207 = vshrl.u32 920167782, %v195
    %v208 = vor.u32 %v206, %v207
    %v209 = vshll.u32 920167782, %v194
    %v210 = vshrl.u32 1326507024, %v195
    %v211 = vor.u32 %v209, %v210
    %vm212 = vcmp.lt.s32.totalorder %v193, 1
    %vm213 = vcmp.lt.s32.totalorder %v193, 2
    %vm214 = vcmp.lt.s32.totalorder %v193, 3
    %vm215 = vcmp.lt.s32.totalorder %v193, 4
    %v216 = vsel %vm212, %v196, %v199
    %v217 = vsel %vm215, %v205, 2102212464
    %v218 = vsel %vm214, %v202, %v217
    %v219 = vsel %vm213, %v216, %v218
    %v220 = vsel %vm212, %v199, %v202
    %v221 = vsel %vm215, %v208, 920167782
    %v222 = vsel %vm214, %v205, %v221
    %v223 = vsel %vm213, %v220, %v222
    %v224 = vsel %vm212, %v202, %v205
    %v225 = vsel %vm215, %v211, 1326507024
    %v226 = vsel %vm214, %v208, %v225
    %v227 = vsel %vm213, %v224, %v226
    %v228 = vshll.u32 %v188, 8
    %v229 = vand.u32 %v228, 65535
    %v230 = vshrl.u32 %v228, 16
    %v231 = vand.u32 %v227, 65535
    %v232 = vshrl.u32 %v227, 16
    %v233 = vmul.u32 %v229, %v231
    %v234 = vmul.u32 %v229, %v232
    %v235 = vmul.u32 %v230, %v231
    %v236 = vmul.u32 %v230, %v232
    %v237 = vshll.u32 %v234, 16
    %v238 = vshrl.u32 %v234, 16
    %v239 = vshll.u32 %v235, 16
    %v240 = vshrl.u32 %v235, 16
    %vm241 = vc.u32 %v233, %v237
    %v242 = vsel %vm241, 1, 0
    %v243 = vadd.s32 %v233, %v237
    %v244 = vadd.s32 %v236, %v242
    %vm245 = vc.u32 %v243, %v239
    %v246 = vsel %vm245, 1, 0
    %v247 = vadd.s32 %v243, %v239
    %v248 = vadd.s32 %v244, %v246
    %v249 = vadd.s32 %v248, %v238
    %v250 = vadd.s32 %v249, %v240
    %v251 = vand.u32 %v228, 65535
    %v252 = vshrl.u32 %v228, 16
    %v253 = vand.u32 %v223, 65535
    %v254 = vshrl.u32 %v223, 16
    %v255 = vmul.u32 %v251, %v253
    %v256 = vmul.u32 %v251, %v254
    %v257 = vmul.u32 %v252, %v253
    %v258 = vmul.u32 %v252, %v254
    %v259 = vshll.u32 %v256, 16
    %v260 = vshrl.u32 %v256, 16
    %v261 = vshll.u32 %v257, 16
    %v262 = vshrl.u32 %v257, 16
    %vm263 = vc.u32 %v255, %v259
    %v264 = vsel %vm263, 1, 0
    %v265 = vadd.s32 %v255, %v259
    %v266 = vadd.s32 %v258, %v264
    %vm267 = vc.u32 %v265, %v261
    %v268 = vsel %vm267, 1, 0
    %v269 = vadd.s32 %v265, %v261
    %v270 = vadd.s32 %v266, %v268
    %v271 = vadd.s32 %v270, %v260
    %v272 = vadd.s32 %v271, %v262
    %v273 = vmul.u32 %v228, %v219
    %v274 = vadd.s32 %v250, %v269
    %vm275 = vc.u32 %v250, %v269
    %v276 = vadd.s32 %v272, 1
    %v277 = vsel %vm275, %v276, %v272
    %v278 = vadd.s32 %v273, %v277
    %v279 = vadd.s32 %v278, 536870912
    %v280 = vshrl.u32 %v279, 30
    %v281 = vshll.u32 %v280, 30
    %v282 = vsub.s32 %v278, %v281
    %vm283 = vcmp.lt.s32.totalorder %v282, 0
    %v284 = vsub.s32 0, %v282
    %v285 = vsel %vm283, %v284, %v282
    %v286 = vclz %v285
    %v287 = vsub.s32 %v286, 2
    %vm288 = vcmp.gt.s32.totalorder 0, %v287
    %v289 = vsel %vm288, 0, %v287
    %v290 = vsub.s32 32, %v289
    %v291 = vshll.u32 %v282, %v289
    %v292 = vshrl.u32 %v274, %v290
    %v293 = vor.u32 %v291, %v292
    %v294 = vsub.s32 4294967266, %v289
    %v295 = vadd.s32 %v294, 127
    %v296 = vshll.u32 %v295, 23
    %v297 = vor.u32 4788187, %v296
    %v298 = vand.u32 2147483647, %v297
    %v300 = vcvt.s32.f32 %v293
    %v301 = vmul.f32 %v300, %v298
    %v302 = vxor.u32 %v301, 2147483648
    %v303 = vsel %vm182, %v302, %v301
    %v304 = vsub.s32 4, %v280
    %v305 = vsel %vm182, %v304, %v280
    %v306 = vsel %vm181, %v23, %v303
    %v307 = vsel %vm181, 0, %v305
    %v308 = vmul.f32 %v306, %v306
    %v309 = vmul.f32 %v308, -0.001358992
    %v310 = vadd.f32 %v309, 0.041655596
    %v311 = vmul.f32 %v308, %v310
    %v312 = vadd.f32 %v311, -0.4999988
    %v313 = vmul.f32 %v308, %v312
    %v314 = vadd.f32 1.0, %v313
    %v315 = vmul.f32 %v306, %v306
    %v316 = vmul.f32 %v315, -0.00019511016
    %v317 = vadd.f32 %v316, 0.008332121
    %v318 = vmul.f32 %v315, %v317
    %v319 = vadd.f32 %v318, -0.16666654
    %v320 = vmul.f32 %v315, %v319
    %v321 = vadd.f32 %v320, 1.0
    %v322 = vmul.f32 %v321, %v306
    %vm323 = vweird.f32 %v23
    %v324 = vand.u32 %v307, 3
    %vm325 = vcmp.lt.s32.totalorder %v324, 2
    %vm326 = vcmp.eq.s32.totalorder %v324, 0
    %v327 = vxor.u32 %v322, 2147483648
    %v328 = vsel %vm326, %v314, %v327
    %vm329 = vcmp.eq.s32.totalorder %v324, 2
    %v330 = vxor.u32 %v314, 2147483648
    %v331 = vsel %vm329, %v330, %v322
    %v332 = vsel %vm325, %v328, %v331
    %v333 = vsel %vm323, nan, %v332
    %s334 = scalar_lea.vmem [#allocation5], 8
    %335 = vst [vmem:[%s334] sm:$0xff] %v179
    %s336 = scalar_lea.vmem [#allocation5], 16
    %337 = vst [vmem:[%s336] sm:$0xff] %v333
    %v338 = vmul.f32 %v179, 2.0
    %v339 = vmul.f32 %v338, %v333
    %v340 = vmul.f32 %v338, %v179
    %v341 = vsub.f32 1.0, %v340
    %s342 = scalar_lea.vmem [#allocation5], 24
    %343 = vst [vmem:[%s342] sm:$0xff] %v339
    %s344 = scalar_lea.vmem [#allocation5], 32
    %345 = vst [vmem:[%s344] sm:$0xff] %v341
    %v346 = vmul.f32 %v339, 2.0
    %v347 = vmul.f32 %v346, %v341
    %v348 = vmul.f32 %v346, %v339
    %v349 = vsub.f32 1.0, %v348
    %s350 = scalar_lea.vmem [#allocation5], 40
    %351 = vst [vmem:[%s350] sm:$0xff] %v347
    %s352 = scalar_lea.vmem [#allocation5], 48
    %353 = vst [vmem:[%s352] sm:$0xff] %v349
    %v354 = vmul.f32 %v347, 2.0
    %v355 = vmul.f32 %v354, %v349
    %v356 = vmul.f32 %v354, %v347
    %v357 = vsub.f32 1.0, %v356
    %s358 = scalar_lea.vmem [#allocation5], 56
    %359 = vst [vmem:[%s358] sm:$0xff] %v355
    %s360 = scalar_lea.vmem [#allocation5], 64
    %361 = vst [vmem:[%s360] sm:$0xff] %v357
    // Predicated region
    $region10: #{tpu_custom_call.1} parent=1 // pred_check
      _
    $region11: #{tpu_custom_call.1} parent=1 // pred_check_branch
      %363 = sbr.rel (0) target = $region13
    $region12: #{tpu_custom_call.1} parent=1 // pred_region
      %365 = vsyncadd [#allocation4], 0
      %s366 = sshll.u32 [#allocation5], 4
      %s367 = int_to_ptr.vmem [resolvable:$true] %s366
      %s368 = sshll.u32 %s1, 4
      %s369 = int_to_ptr.hbm [resolvable:$true] %s368
      %374 = dma.vmem_to_hbm [thread:$0]  %s367, 1152, %s369, [#allocation4], 128, 128, 8
    $region13: #{tpu_custom_call.1} parent=1 // pred_fallthru
      _
    // Predicated region
    $region14: #{tpu_custom_call.1} parent=1 // pred_check
      _
    $region15: #{tpu_custom_call.1} parent=1 // pred_check_branch
      %376 = sbr.rel (0) target = $region17
    $region16: #{tpu_custom_call.1} parent=1 // pred_region
      %378 = dma.done [#allocation4], 1152
    $region17: #{tpu_custom_call.1} parent=1 // pred_fallthru
      _
    %379 = vsyncpa [#allocation3], 1
    %380 = vsyncpa [#allocation4], 1

</llo_original>
